<compile_context>
chip_gen: v6e
topology: v6e:2x2x1
jax: 0.10.0
libtpu: 0.0.40
codegen_flags: <defaults>
</compile_context>

<pallas_src>
import functools

import jax
import jax.numpy as jnp
from jax.experimental import pallas as pl
from jax.experimental.pallas import tpu as pltpu


def _round_up(n, m):
    return ((n + m - 1) // m) * m


def _slab_layout(d_in, hidden):
    """Row offsets of the packed per-model weight slab (each section 8-row aligned)."""
    r_w_ih = 0
    r_w_hh = _round_up(r_w_ih + d_in, 8)
    r_b = _round_up(r_w_hh + hidden, 8)
    r_w_out = _round_up(r_b + 1, 8)
    r_b_out = _round_up(r_w_out + hidden, 8)
    n_rows = _round_up(r_b_out + 1, 8)
    return r_w_ih, r_w_hh, r_b, r_w_out, r_b_out, n_rows


def _lstm_head_kernel(model_idx_ref, x_ref, slab_ref, o_ref, *,
                      seq_len, batch, d_in, hidden, d_out, rows):
    """LSTM recurrence + Linear + ReLU head for the selected model.

    model_idx_ref : (1,) SMEM    selected model (consumed by the index_maps only)
    x_ref         : (T*B, D)     time-major flattened input sequence
    slab_ref      : (R, 4H)      packed weights of the SELECTED model (one DMA):
                                   rows[0]: W_ih (D,4H)   rows[1]: W_hh (H,4H)
                                   rows[2]: b_ih+b_hh     rows[3]: W_out (H,O)
                                   rows[4]: b_out
    o_ref         : (B, O)       result (ReLU applied)
    """
    del model_idx_ref  # slab selection happens in the index_map
    B, T, D, H, O = batch, seq_len, d_in, hidden, d_out
    G = 4 * H
    r_w_ih, r_w_hh, r_b, r_w_out, r_b_out, _ = rows

    # ---- Unpack the single weight slab with static, 8-aligned row slices.
    w_ih = slab_ref[r_w_ih:r_w_ih + D, :]          # (D, 4H)
    w_hh = slab_ref[r_w_hh:r_w_hh + H, :]          # (H, 4H)
    b = slab_ref[r_b:r_b + 1, :]                   # (1, 4H)  (= b_ih + b_hh)
    w_out = slab_ref[r_w_out:r_w_out + H, 0:O]     # (H, O)
    b_out = slab_ref[r_b_out:r_b_out + 1, 0:O]     # (1, O)

    # ---- Hoisted input projection (+ bias fold): one MXU pass for all steps,
    # result kept in vregs (no VMEM scratch round trips).
    pre = jnp.dot(x_ref[...], w_ih, preferred_element_type=jnp.float32) + b  # (T*B, 4H)

    # Pre-broadcast W_hh rows once (loop-invariant; JAX does not CSE
    # broadcast_in_dim, so do it outside the unrolled recurrence).
    w_hh_b = [jnp.broadcast_to(w_hh[j:j + 1, :], (B, G)) for j in range(H)]

    def recur_matmul(h):
        # h @ W_hh on the VPU: H lane-broadcast FMAs summed as a balanced tree,
        # so the serial dependence is log2(H) adds instead of an MXU
        # fill + result-FIFO pop per step.
        terms = [h[:, j:j + 1] * w_hh_b[j] for j in range(H)]
        while len(terms) > 1:
            terms = [terms[k] + terms[k + 1] for k in range(0, len(terms), 2)]
        return terms[0]

    def cell(gates, c_prev):
        # One EUP sigmoid push covers i, f, o (the whole (B,4H) tensor is one
        # vreg); one tanh for g; one tanh for the new cell state. Gate order
        # matches PyTorch: i, f, g, o.
        sig = jax.nn.sigmoid(gates)
        g_g = jnp.tanh(gates[:, 2 * H:3 * H])
        c_new = sig[:, 1 * H:2 * H] * c_prev + sig[:, 0 * H:1 * H] * g_g
        h_new = sig[:, 3 * H:4 * H] * jnp.tanh(c_new)
        return h_new, c_new

    # ---- t = 0 peeled: h0 = c0 = 0, so the gates are just the pre-projection
    # and the f*c_prev term vanishes.
    gates0 = pre[0:B, :]
    sig0 = jax.nn.sigmoid(gates0)
    c = sig0[:, 0:H] * jnp.tanh(gates0[:, 2 * H:3 * H])
    h = sig0[:, 3 * H:4 * H] * jnp.tanh(c)

    # ---- Remaining steps: fully unrolled with static slices into `pre`
    # (T is small and static).
    for t in range(1, T):
        gates = pre[t * B:(t + 1) * B, :] + recur_matmul(h)
        h, c = cell(gates, c)

    # ---- Output head: Linear + bias + ReLU fused into the final store.
    y = jnp.dot(h, w_out, preferred_element_type=jnp.float32) + b_out
    o_ref[...] = jnp.maximum(y, 0.0)  # activation == 'relu'


def multilstm_pallas(x_btd, slab_all, rnn_model_num):
    """x_btd: (B, T, D) batch-first. slab_all: (M, R, 4H) packed weights of ALL models.

    Only model `rnn_model_num` (1-indexed) is DMA'd and computed, via a
    scalar-prefetch-driven index_map on the packed slab (no recompile per model).
    """
    M, R, G = slab_all.shape
    B, T, D = x_btd.shape
    H = G // 4
    O = D
    rows = _slab_layout(D, H)
    assert rows[-1] == R, "slab layout mismatch"

    # Tiny host-side rearrangement to time-major rows (T*B, D); negligible at
    # these sizes (at scale, fold it into the surrounding jit instead).
    x_2d = jnp.transpose(x_btd, (1, 0, 2)).reshape(T * B, D)
    model_idx = jnp.asarray([rnn_model_num - 1], jnp.int32)

    kernel = functools.partial(_lstm_head_kernel, seq_len=T, batch=B,
                               d_in=D, hidden=H, d_out=O, rows=rows)

    grid_spec = pltpu.PrefetchScalarGridSpec(
        num_scalar_prefetch=1,
        grid=(1,),
        in_specs=[
            pl.BlockSpec((T * B, D), lambda i, m: (0, 0)),
            # ONE DMA: every weight/bias of the selected model in a single slab.
            pl.BlockSpec((None, R, G), lambda i, m: (m[0], 0, 0)),
        ],
        out_specs=pl.BlockSpec((B, O), lambda i, m: (0, 0)),
    )

    flops = 2 * T * B * D * G + 2 * T * B * H * G + 2 * B * H * O
    transcendentals = T * B * (G + 2 * H)
    bytes_accessed = 4 * (T * B * D + R * G + B * O) + 4

    return pl.pallas_call(
        kernel,
        out_shape=jax.ShapeDtypeStruct((B, O), jnp.float32),
        grid_spec=grid_spec,
        # grid=(1,): a single tiny forward cannot use a second TensorCore (v7x)
        # or megacore (v6e); add a leading "parallel" axis only when batching
        # many independent sequences/models through this kernel.
        compiler_params=pltpu.CompilerParams(dimension_semantics=("arbitrary",)),
        cost_estimate=pl.CostEstimate(flops=flops,
                                      transcendentals=transcendentals,
                                      bytes_accessed=bytes_accessed),
    )(model_idx, x_2d, slab_all)


def init_multilstm_params(key, in_out_vec_dim, moving_horizon):
    """Deterministic raw params for all models, stacked over axis 0.

    Every model: LSTM(D, 2D), Linear(2D, D).  Weights are stored pre-transposed
    to (in, out) layout, gate order i,f,g,o; LSTM biases folded (b_ih + b_hh).
    (Porting note: real PyTorch LSTM weights are (4H, in) and must be transposed
    into this layout with the i,f,g,o block order preserved.)
    """
    D = in_out_vec_dim
    H = 2 * D
    G = 4 * H
    scale = 1.0 / jnp.sqrt(jnp.float32(H))
    w_ih, w_hh, b, w_out, b_out = [], [], [], [], []
    for _ in range(moving_horizon):
        key, k1, k2, k3, k4, k5, k6 = jax.random.split(key, 7)
        w_ih.append(jax.random.uniform(k1, (D, G), jnp.float32, -scale, scale))
        w_hh.append(jax.random.uniform(k2, (H, G), jnp.float32, -scale, scale))
        b_ih = jax.random.uniform(k3, (1, G), jnp.float32, -scale, scale)
        b_hh = jax.random.uniform(k4, (1, G), jnp.float32, -scale, scale)
        b.append(b_ih + b_hh)
        w_out.append(jax.random.uniform(k5, (H, D), jnp.float32, -scale, scale))
        b_out.append(jax.random.uniform(k6, (1, D), jnp.float32, -scale, scale))
    return (jnp.stack(w_ih), jnp.stack(w_hh), jnp.stack(b),
            jnp.stack(w_out), jnp.stack(b_out))


def pack_params(raw_params):
    """Pack every model's weights into one (M, R, 4H) slab (one DMA per kernel call)."""
    w_ih, w_hh, b, w_out, b_out = raw_params
    M, D, G = w_ih.shape
    H = w_hh.shape[1]
    O = w_out.shape[2]
    r_w_ih, r_w_hh, r_b, r_w_out, r_b_out, R = _slab_layout(D, H)
    slab = jnp.zeros((M, R, G), jnp.float32)
    slab = slab.at[:, r_w_ih:r_w_ih + D, :].set(w_ih)
    slab = slab.at[:, r_w_hh:r_w_hh + H, :].set(w_hh)
    slab = slab.at[:, r_b:r_b + 1, :].set(b)
    slab = slab.at[:, r_w_out:r_w_out + H, :O].set(w_out)
    slab = slab.at[:, r_b_out:r_b_out + 1, :O].set(b_out)
    return slab


def multilstm_reference(x_btd, params):
    """Plain-JAX reference mirroring the PyTorch forward (for verification)."""
    w_ih, w_hh, b, w_out, b_out = params
    B, T, D = x_btd.shape
    H = w_hh.shape[0]
    h = jnp.zeros((B, H), jnp.float32)
    c = jnp.zeros((B, H), jnp.float32)
    for t in range(T):
        gates = x_btd[:, t, :] @ w_ih + h @ w_hh + b
        i_g = jax.nn.sigmoid(gates[:, 0 * H:1 * H])
        f_g = jax.nn.sigmoid(gates[:, 1 * H:2 * H])
        g_g = jnp.tanh(gates[:, 2 * H:3 * H])
        o_g = jax.nn.sigmoid(gates[:, 3 * H:4 * H])
        c = f_g * c + i_g * g_g
        h = o_g * jnp.tanh(c)
    return jnp.maximum(h @ w_out + b_out, 0.0)


if __name__ == "__main__":
    # Module config: MultiLSTM(in_out_vec_dim=4, moving_horizon=3, activation='relu')
    # TODO(synk): the module's two-layer-LSTM branch is dead code (build_rnn always
    # returns the single-layer variant), so it is intentionally not implemented.
    in_out_vec_dim = 4
    moving_horizon = 3
    batch, seq = 2, 8
    rnn_model_num = 2  # which of the moving_horizon models to run (1-indexed)

    key = jax.random.PRNGKey(0)
    kx, kp = jax.random.split(key)
    x = jax.random.normal(kx, (batch, seq, in_out_vec_dim), jnp.float32)

    raw = init_multilstm_params(kp, in_out_vec_dim, moving_horizon)
    slab = pack_params(raw)

    y = multilstm_pallas(x, slab, rnn_model_num)
    y = jax.block_until_ready(y)

    params_sel = tuple(p[rnn_model_num - 1] for p in raw)
    y_ref = multilstm_reference(x, params_sel)
    assert y.shape == (batch, in_out_vec_dim)
    assert jnp.allclose(y, y_ref, atol=1e-5, rtol=1e-5), "mismatch vs reference"

    print("KERNEL_OK")
</pallas_src>

<mosaic_0001>
module attributes {stable_mosaic.version = 11 : i64} {
  func.func @_lstm_head_kernel(%arg0: i32, %arg1: memref<1xi32, #tpu.memory_space<smem>>, %arg2: memref<16x4xf32, #tpu.memory_space<vmem>>, %arg3: memref<1x40x32xf32, #tpu.memory_space<vmem>>, %arg4: memref<2x4xf32, #tpu.memory_space<vmem>>) attributes {dimension_semantics = [#tpu.dimension_semantics<arbitrary>], iteration_bounds = array<i64: 1>, scalar_prefetch = 1 : i64, scratch_operands = 0 : i64, tpu.core_type = #tpu.core_type<tc>, window_params = [{pipeline_mode = #tpu.pipeline_mode<synchronous>, transform_indices = @transform_0, window_bounds = array<i64: 16, 4>}, {transform_indices = @transform_1, window_bounds = array<i64: 1, 40, 32>}, {pipeline_mode = #tpu.pipeline_mode<synchronous>, transform_indices = @transform_2, window_bounds = array<i64: 2, 4>}]} {
    %c0 = arith.constant 0 : index
    %c0_0 = arith.constant 0 : index
    %c0_1 = arith.constant 0 : index
    %0 = vector.load %arg3[%c0, %c0_0, %c0_1] : memref<1x40x32xf32, #tpu.memory_space<vmem>>, vector<1x4x32xf32>
    %1 = vector.shape_cast %0 : vector<1x4x32xf32> to vector<4x32xf32>
    %c0_2 = arith.constant 0 : index
    %c8 = arith.constant 8 : index
    %c0_3 = arith.constant 0 : index
    %2 = vector.load %arg3[%c0_2, %c8, %c0_3] : memref<1x40x32xf32, #tpu.memory_space<vmem>>, vector<1x8x32xf32>
    %3 = vector.shape_cast %2 : vector<1x8x32xf32> to vector<8x32xf32>
    %c0_4 = arith.constant 0 : index
    %c16 = arith.constant 16 : index
    %c0_5 = arith.constant 0 : index
    %4 = vector.load %arg3[%c0_4, %c16, %c0_5] : memref<1x40x32xf32, #tpu.memory_space<vmem>>, vector<1x1x32xf32>
    %5 = vector.shape_cast %4 : vector<1x1x32xf32> to vector<1x32xf32>
    %c0_6 = arith.constant 0 : index
    %c24 = arith.constant 24 : index
    %c0_7 = arith.constant 0 : index
    %6 = vector.load %arg3[%c0_6, %c24, %c0_7] : memref<1x40x32xf32, #tpu.memory_space<vmem>>, vector<1x8x4xf32>
    %7 = vector.shape_cast %6 : vector<1x8x4xf32> to vector<8x4xf32>
    %c0_8 = arith.constant 0 : index
    %c32 = arith.constant 32 : index
    %c0_9 = arith.constant 0 : index
    %8 = vector.load %arg3[%c0_8, %c32, %c0_9] : memref<1x40x32xf32, #tpu.memory_space<vmem>>, vector<1x1x4xf32>
    %9 = vector.shape_cast %8 : vector<1x1x4xf32> to vector<1x4xf32>
    %c0_10 = arith.constant 0 : index
    %c0_11 = arith.constant 0 : index
    %10 = vector.load %arg2[%c0_10, %c0_11] : memref<16x4xf32, #tpu.memory_space<vmem>>, vector<16x4xf32>
    %cst = arith.constant dense<0.000000e+00> : vector<16x32xf32>
    %11 = tpu.matmul %10, %1, %cst {dimension_numbers = #tpu.dot_dimension_numbers<[1], [0], [0], [1], [0, 0, 1, 1], [], []>} : vector<16x4xf32>, vector<4x32xf32>, vector<16x32xf32> -> vector<16x32xf32>
    %12 = vector.broadcast %5 : vector<1x32xf32> to vector<16x32xf32>
    %13 = arith.addf %11, %12 : vector<16x32xf32>
    %14 = vector.extract_strided_slice %3 {offsets = [0, 0], sizes = [1, 32], strides = [1, 1]} : vector<8x32xf32> to vector<1x32xf32>
    %15 = vector.shape_cast %14 : vector<1x32xf32> to vector<1x32xf32>
    %16 = vector.broadcast %15 : vector<1x32xf32> to vector<2x32xf32>
    %17 = vector.extract_strided_slice %3 {offsets = [1, 0], sizes = [1, 32], strides = [1, 1]} : vector<8x32xf32> to vector<1x32xf32>
    %18 = vector.shape_cast %17 : vector<1x32xf32> to vector<1x32xf32>
    %19 = vector.broadcast %18 : vector<1x32xf32> to vector<2x32xf32>
    %20 = vector.extract_strided_slice %3 {offsets = [2, 0], sizes = [1, 32], strides = [1, 1]} : vector<8x32xf32> to vector<1x32xf32>
    %21 = vector.shape_cast %20 : vector<1x32xf32> to vector<1x32xf32>
    %22 = vector.broadcast %21 : vector<1x32xf32> to vector<2x32xf32>
    %23 = vector.extract_strided_slice %3 {offsets = [3, 0], sizes = [1, 32], strides = [1, 1]} : vector<8x32xf32> to vector<1x32xf32>
    %24 = vector.shape_cast %23 : vector<1x32xf32> to vector<1x32xf32>
    %25 = vector.broadcast %24 : vector<1x32xf32> to vector<2x32xf32>
    %26 = vector.extract_strided_slice %3 {offsets = [4, 0], sizes = [1, 32], strides = [1, 1]} : vector<8x32xf32> to vector<1x32xf32>
    %27 = vector.shape_cast %26 : vector<1x32xf32> to vector<1x32xf32>
    %28 = vector.broadcast %27 : vector<1x32xf32> to vector<2x32xf32>
    %29 = vector.extract_strided_slice %3 {offsets = [5, 0], sizes = [1, 32], strides = [1, 1]} : vector<8x32xf32> to vector<1x32xf32>
    %30 = vector.shape_cast %29 : vector<1x32xf32> to vector<1x32xf32>
    %31 = vector.broadcast %30 : vector<1x32xf32> to vector<2x32xf32>
    %32 = vector.extract_strided_slice %3 {offsets = [6, 0], sizes = [1, 32], strides = [1, 1]} : vector<8x32xf32> to vector<1x32xf32>
    %33 = vector.shape_cast %32 : vector<1x32xf32> to vector<1x32xf32>
    %34 = vector.broadcast %33 : vector<1x32xf32> to vector<2x32xf32>
    %35 = vector.extract_strided_slice %3 {offsets = [7, 0], sizes = [1, 32], strides = [1, 1]} : vector<8x32xf32> to vector<1x32xf32>
    %36 = vector.shape_cast %35 : vector<1x32xf32> to vector<1x32xf32>
    %37 = vector.broadcast %36 : vector<1x32xf32> to vector<2x32xf32>
    %38 = vector.extract_strided_slice %13 {offsets = [0, 0], sizes = [2, 32], strides = [1, 1]} : vector<16x32xf32> to vector<2x32xf32>
    %39 = arith.negf %38 : vector<2x32xf32>
    %40 = math.exp %39 : vector<2x32xf32>
    %cst_12 = arith.constant 1.000000e+00 : f32
    %41 = vector.broadcast %cst_12 : f32 to vector<2x32xf32>
    %42 = arith.addf %41, %40 : vector<2x32xf32>
    %43 = arith.divf %41, %42 : vector<2x32xf32>
    %44 = vector.extract_strided_slice %43 {offsets = [0, 0], sizes = [2, 8], strides = [1, 1]} : vector<2x32xf32> to vector<2x8xf32>
    %45 = vector.extract_strided_slice %38 {offsets = [0, 16], sizes = [2, 8], strides = [1, 1]} : vector<2x32xf32> to vector<2x8xf32>
    %46 = math.tanh %45 : vector<2x8xf32>
    %47 = arith.mulf %44, %46 : vector<2x8xf32>
    %48 = vector.extract_strided_slice %43 {offsets = [0, 24], sizes = [2, 8], strides = [1, 1]} : vector<2x32xf32> to vector<2x8xf32>
    %49 = math.tanh %47 : vector<2x8xf32>
    %50 = arith.mulf %48, %49 : vector<2x8xf32>
    %51 = vector.extract_strided_slice %13 {offsets = [2, 0], sizes = [2, 32], strides = [1, 1]} : vector<16x32xf32> to vector<2x32xf32>
    %52 = vector.extract_strided_slice %50 {offsets = [0, 0], sizes = [2, 1], strides = [1, 1]} : vector<2x8xf32> to vector<2x1xf32>
    %53 = vector.broadcast %52 : vector<2x1xf32> to vector<2x32xf32>
    %54 = arith.mulf %53, %16 : vector<2x32xf32>
    %55 = vector.extract_strided_slice %50 {offsets = [0, 1], sizes = [2, 1], strides = [1, 1]} : vector<2x8xf32> to vector<2x1xf32>
    %56 = vector.broadcast %55 : vector<2x1xf32> to vector<2x32xf32>
    %57 = arith.mulf %56, %19 : vector<2x32xf32>
    %58 = vector.extract_strided_slice %50 {offsets = [0, 2], sizes = [2, 1], strides = [1, 1]} : vector<2x8xf32> to vector<2x1xf32>
    %59 = vector.broadcast %58 : vector<2x1xf32> to vector<2x32xf32>
    %60 = arith.mulf %59, %22 : vector<2x32xf32>
    %61 = vector.extract_strided_slice %50 {offsets = [0, 3], sizes = [2, 1], strides = [1, 1]} : vector<2x8xf32> to vector<2x1xf32>
    %62 = vector.broadcast %61 : vector<2x1xf32> to vector<2x32xf32>
    %63 = arith.mulf %62, %25 : vector<2x32xf32>
    %64 = vector.extract_strided_slice %50 {offsets = [0, 4], sizes = [2, 1], strides = [1, 1]} : vector<2x8xf32> to vector<2x1xf32>
    %65 = vector.broadcast %64 : vector<2x1xf32> to vector<2x32xf32>
    %66 = arith.mulf %65, %28 : vector<2x32xf32>
    %67 = vector.extract_strided_slice %50 {offsets = [0, 5], sizes = [2, 1], strides = [1, 1]} : vector<2x8xf32> to vector<2x1xf32>
    %68 = vector.broadcast %67 : vector<2x1xf32> to vector<2x32xf32>
    %69 = arith.mulf %68, %31 : vector<2x32xf32>
    %70 = vector.extract_strided_slice %50 {offsets = [0, 6], sizes = [2, 1], strides = [1, 1]} : vector<2x8xf32> to vector<2x1xf32>
    %71 = vector.broadcast %70 : vector<2x1xf32> to vector<2x32xf32>
    %72 = arith.mulf %71, %34 : vector<2x32xf32>
    %73 = vector.extract_strided_slice %50 {offsets = [0, 7], sizes = [2, 1], strides = [1, 1]} : vector<2x8xf32> to vector<2x1xf32>
    %74 = vector.broadcast %73 : vector<2x1xf32> to vector<2x32xf32>
    %75 = arith.mulf %74, %37 : vector<2x32xf32>
    %76 = arith.addf %54, %57 : vector<2x32xf32>
    %77 = arith.addf %60, %63 : vector<2x32xf32>
    %78 = arith.addf %66, %69 : vector<2x32xf32>
    %79 = arith.addf %72, %75 : vector<2x32xf32>
    %80 = arith.addf %76, %77 : vector<2x32xf32>
    %81 = arith.addf %78, %79 : vector<2x32xf32>
    %82 = arith.addf %80, %81 : vector<2x32xf32>
    %83 = arith.addf %51, %82 : vector<2x32xf32>
    %84 = arith.negf %83 : vector<2x32xf32>
    %85 = math.exp %84 : vector<2x32xf32>
    %cst_13 = arith.constant 1.000000e+00 : f32
    %86 = vector.broadcast %cst_13 : f32 to vector<2x32xf32>
    %87 = arith.addf %86, %85 : vector<2x32xf32>
    %88 = arith.divf %86, %87 : vector<2x32xf32>
    %89 = vector.extract_strided_slice %83 {offsets = [0, 16], sizes = [2, 8], strides = [1, 1]} : vector<2x32xf32> to vector<2x8xf32>
    %90 = math.tanh %89 : vector<2x8xf32>
    %91 = vector.extract_strided_slice %88 {offsets = [0, 8], sizes = [2, 8], strides = [1, 1]} : vector<2x32xf32> to vector<2x8xf32>
    %92 = arith.mulf %91, %47 : vector<2x8xf32>
    %93 = vector.extract_strided_slice %88 {offsets = [0, 0], sizes = [2, 8], strides = [1, 1]} : vector<2x32xf32> to vector<2x8xf32>
    %94 = arith.mulf %93, %90 : vector<2x8xf32>
    %95 = arith.addf %92, %94 : vector<2x8xf32>
    %96 = vector.extract_strided_slice %88 {offsets = [0, 24], sizes = [2, 8], strides = [1, 1]} : vector<2x32xf32> to vector<2x8xf32>
    %97 = math.tanh %95 : vector<2x8xf32>
    %98 = arith.mulf %96, %97 : vector<2x8xf32>
    %99 = vector.extract_strided_slice %13 {offsets = [4, 0], sizes = [2, 32], strides = [1, 1]} : vector<16x32xf32> to vector<2x32xf32>
    %100 = vector.extract_strided_slice %98 {offsets = [0, 0], sizes = [2, 1], strides = [1, 1]} : vector<2x8xf32> to vector<2x1xf32>
    %101 = vector.broadcast %100 : vector<2x1xf32> to vector<2x32xf32>
    %102 = arith.mulf %101, %16 : vector<2x32xf32>
    %103 = vector.extract_strided_slice %98 {offsets = [0, 1], sizes = [2, 1], strides = [1, 1]} : vector<2x8xf32> to vector<2x1xf32>
    %104 = vector.broadcast %103 : vector<2x1xf32> to vector<2x32xf32>
    %105 = arith.mulf %104, %19 : vector<2x32xf32>
    %106 = vector.extract_strided_slice %98 {offsets = [0, 2], sizes = [2, 1], strides = [1, 1]} : vector<2x8xf32> to vector<2x1xf32>
    %107 = vector.broadcast %106 : vector<2x1xf32> to vector<2x32xf32>
    %108 = arith.mulf %107, %22 : vector<2x32xf32>
    %109 = vector.extract_strided_slice %98 {offsets = [0, 3], sizes = [2, 1], strides = [1, 1]} : vector<2x8xf32> to vector<2x1xf32>
    %110 = vector.broadcast %109 : vector<2x1xf32> to vector<2x32xf32>
    %111 = arith.mulf %110, %25 : vector<2x32xf32>
    %112 = vector.extract_strided_slice %98 {offsets = [0, 4], sizes = [2, 1], strides = [1, 1]} : vector<2x8xf32> to vector<2x1xf32>
    %113 = vector.broadcast %112 : vector<2x1xf32> to vector<2x32xf32>
    %114 = arith.mulf %113, %28 : vector<2x32xf32>
    %115 = vector.extract_strided_slice %98 {offsets = [0, 5], sizes = [2, 1], strides = [1, 1]} : vector<2x8xf32> to vector<2x1xf32>
    %116 = vector.broadcast %115 : vector<2x1xf32> to vector<2x32xf32>
    %117 = arith.mulf %116, %31 : vector<2x32xf32>
    %118 = vector.extract_strided_slice %98 {offsets = [0, 6], sizes = [2, 1], strides = [1, 1]} : vector<2x8xf32> to vector<2x1xf32>
    %119 = vector.broadcast %118 : vector<2x1xf32> to vector<2x32xf32>
    %120 = arith.mulf %119, %34 : vector<2x32xf32>
    %121 = vector.extract_strided_slice %98 {offsets = [0, 7], sizes = [2, 1], strides = [1, 1]} : vector<2x8xf32> to vector<2x1xf32>
    %122 = vector.broadcast %121 : vector<2x1xf32> to vector<2x32xf32>
    %123 = arith.mulf %122, %37 : vector<2x32xf32>
    %124 = arith.addf %102, %105 : vector<2x32xf32>
    %125 = arith.addf %108, %111 : vector<2x32xf32>
    %126 = arith.addf %114, %117 : vector<2x32xf32>
    %127 = arith.addf %120, %123 : vector<2x32xf32>
    %128 = arith.addf %124, %125 : vector<2x32xf32>
    %129 = arith.addf %126, %127 : vector<2x32xf32>
    %130 = arith.addf %128, %129 : vector<2x32xf32>
    %131 = arith.addf %99, %130 : vector<2x32xf32>
    %132 = arith.negf %131 : vector<2x32xf32>
    %133 = math.exp %132 : vector<2x32xf32>
    %cst_14 = arith.constant 1.000000e+00 : f32
    %134 = vector.broadcast %cst_14 : f32 to vector<2x32xf32>
    %135 = arith.addf %134, %133 : vector<2x32xf32>
    %136 = arith.divf %134, %135 : vector<2x32xf32>
    %137 = vector.extract_strided_slice %131 {offsets = [0, 16], sizes = [2, 8], strides = [1, 1]} : vector<2x32xf32> to vector<2x8xf32>
    %138 = math.tanh %137 : vector<2x8xf32>
    %139 = vector.extract_strided_slice %136 {offsets = [0, 8], sizes = [2, 8], strides = [1, 1]} : vector<2x32xf32> to vector<2x8xf32>
    %140 = arith.mulf %139, %95 : vector<2x8xf32>
    %141 = vector.extract_strided_slice %136 {offsets = [0, 0], sizes = [2, 8], strides = [1, 1]} : vector<2x32xf32> to vector<2x8xf32>
    %142 = arith.mulf %141, %138 : vector<2x8xf32>
    %143 = arith.addf %140, %142 : vector<2x8xf32>
    %144 = vector.extract_strided_slice %136 {offsets = [0, 24], sizes = [2, 8], strides = [1, 1]} : vector<2x32xf32> to vector<2x8xf32>
    %145 = math.tanh %143 : vector<2x8xf32>
    %146 = arith.mulf %144, %145 : vector<2x8xf32>
    %147 = vector.extract_strided_slice %13 {offsets = [6, 0], sizes = [2, 32], strides = [1, 1]} : vector<16x32xf32> to vector<2x32xf32>
    %148 = vector.extract_strided_slice %146 {offsets = [0, 0], sizes = [2, 1], strides = [1, 1]} : vector<2x8xf32> to vector<2x1xf32>
    %149 = vector.broadcast %148 : vector<2x1xf32> to vector<2x32xf32>
    %150 = arith.mulf %149, %16 : vector<2x32xf32>
    %151 = vector.extract_strided_slice %146 {offsets = [0, 1], sizes = [2, 1], strides = [1, 1]} : vector<2x8xf32> to vector<2x1xf32>
    %152 = vector.broadcast %151 : vector<2x1xf32> to vector<2x32xf32>
    %153 = arith.mulf %152, %19 : vector<2x32xf32>
    %154 = vector.extract_strided_slice %146 {offsets = [0, 2], sizes = [2, 1], strides = [1, 1]} : vector<2x8xf32> to vector<2x1xf32>
    %155 = vector.broadcast %154 : vector<2x1xf32> to vector<2x32xf32>
    %156 = arith.mulf %155, %22 : vector<2x32xf32>
    %157 = vector.extract_strided_slice %146 {offsets = [0, 3], sizes = [2, 1], strides = [1, 1]} : vector<2x8xf32> to vector<2x1xf32>
    %158 = vector.broadcast %157 : vector<2x1xf32> to vector<2x32xf32>
    %159 = arith.mulf %158, %25 : vector<2x32xf32>
    %160 = vector.extract_strided_slice %146 {offsets = [0, 4], sizes = [2, 1], strides = [1, 1]} : vector<2x8xf32> to vector<2x1xf32>
    %161 = vector.broadcast %160 : vector<2x1xf32> to vector<2x32xf32>
    %162 = arith.mulf %161, %28 : vector<2x32xf32>
    %163 = vector.extract_strided_slice %146 {offsets = [0, 5], sizes = [2, 1], strides = [1, 1]} : vector<2x8xf32> to vector<2x1xf32>
    %164 = vector.broadcast %163 : vector<2x1xf32> to vector<2x32xf32>
    %165 = arith.mulf %164, %31 : vector<2x32xf32>
    %166 = vector.extract_strided_slice %146 {offsets = [0, 6], sizes = [2, 1], strides = [1, 1]} : vector<2x8xf32> to vector<2x1xf32>
    %167 = vector.broadcast %166 : vector<2x1xf32> to vector<2x32xf32>
    %168 = arith.mulf %167, %34 : vector<2x32xf32>
    %169 = vector.extract_strided_slice %146 {offsets = [0, 7], sizes = [2, 1], strides = [1, 1]} : vector<2x8xf32> to vector<2x1xf32>
    %170 = vector.broadcast %169 : vector<2x1xf32> to vector<2x32xf32>
    %171 = arith.mulf %170, %37 : vector<2x32xf32>
    %172 = arith.addf %150, %153 : vector<2x32xf32>
    %173 = arith.addf %156, %159 : vector<2x32xf32>
    %174 = arith.addf %162, %165 : vector<2x32xf32>
    %175 = arith.addf %168, %171 : vector<2x32xf32>
    %176 = arith.addf %172, %173 : vector<2x32xf32>
    %177 = arith.addf %174, %175 : vector<2x32xf32>
    %178 = arith.addf %176, %177 : vector<2x32xf32>
    %179 = arith.addf %147, %178 : vector<2x32xf32>
    %180 = arith.negf %179 : vector<2x32xf32>
    %181 = math.exp %180 : vector<2x32xf32>
    %cst_15 = arith.constant 1.000000e+00 : f32
    %182 = vector.broadcast %cst_15 : f32 to vector<2x32xf32>
    %183 = arith.addf %182, %181 : vector<2x32xf32>
    %184 = arith.divf %182, %183 : vector<2x32xf32>
    %185 = vector.extract_strided_slice %179 {offsets = [0, 16], sizes = [2, 8], strides = [1, 1]} : vector<2x32xf32> to vector<2x8xf32>
    %186 = math.tanh %185 : vector<2x8xf32>
    %187 = vector.extract_strided_slice %184 {offsets = [0, 8], sizes = [2, 8], strides = [1, 1]} : vector<2x32xf32> to vector<2x8xf32>
    %188 = arith.mulf %187, %143 : vector<2x8xf32>
    %189 = vector.extract_strided_slice %184 {offsets = [0, 0], sizes = [2, 8], strides = [1, 1]} : vector<2x32xf32> to vector<2x8xf32>
    %190 = arith.mulf %189, %186 : vector<2x8xf32>
    %191 = arith.addf %188, %190 : vector<2x8xf32>
    %192 = vector.extract_strided_slice %184 {offsets = [0, 24], sizes = [2, 8], strides = [1, 1]} : vector<2x32xf32> to vector<2x8xf32>
    %193 = math.tanh %191 : vector<2x8xf32>
    %194 = arith.mulf %192, %193 : vector<2x8xf32>
    %195 = vector.extract_strided_slice %13 {offsets = [8, 0], sizes = [2, 32], strides = [1, 1]} : vector<16x32xf32> to vector<2x32xf32>
    %196 = vector.extract_strided_slice %194 {offsets = [0, 0], sizes = [2, 1], strides = [1, 1]} : vector<2x8xf32> to vector<2x1xf32>
    %197 = vector.broadcast %196 : vector<2x1xf32> to vector<2x32xf32>
    %198 = arith.mulf %197, %16 : vector<2x32xf32>
    %199 = vector.extract_strided_slice %194 {offsets = [0, 1], sizes = [2, 1], strides = [1, 1]} : vector<2x8xf32> to vector<2x1xf32>
    %200 = vector.broadcast %199 : vector<2x1xf32> to vector<2x32xf32>
    %201 = arith.mulf %200, %19 : vector<2x32xf32>
    %202 = vector.extract_strided_slice %194 {offsets = [0, 2], sizes = [2, 1], strides = [1, 1]} : vector<2x8xf32> to vector<2x1xf32>
    %203 = vector.broadcast %202 : vector<2x1xf32> to vector<2x32xf32>
    %204 = arith.mulf %203, %22 : vector<2x32xf32>
    %205 = vector.extract_strided_slice %194 {offsets = [0, 3], sizes = [2, 1], strides = [1, 1]} : vector<2x8xf32> to vector<2x1xf32>
    %206 = vector.broadcast %205 : vector<2x1xf32> to vector<2x32xf32>
    %207 = arith.mulf %206, %25 : vector<2x32xf32>
    %208 = vector.extract_strided_slice %194 {offsets = [0, 4], sizes = [2, 1], strides = [1, 1]} : vector<2x8xf32> to vector<2x1xf32>
    %209 = vector.broadcast %208 : vector<2x1xf32> to vector<2x32xf32>
    %210 = arith.mulf %209, %28 : vector<2x32xf32>
    %211 = vector.extract_strided_slice %194 {offsets = [0, 5], sizes = [2, 1], strides = [1, 1]} : vector<2x8xf32> to vector<2x1xf32>
    %212 = vector.broadcast %211 : vector<2x1xf32> to vector<2x32xf32>
    %213 = arith.mulf %212, %31 : vector<2x32xf32>
    %214 = vector.extract_strided_slice %194 {offsets = [0, 6], sizes = [2, 1], strides = [1, 1]} : vector<2x8xf32> to vector<2x1xf32>
    %215 = vector.broadcast %214 : vector<2x1xf32> to vector<2x32xf32>
    %216 = arith.mulf %215, %34 : vector<2x32xf32>
    %217 = vector.extract_strided_slice %194 {offsets = [0, 7], sizes = [2, 1], strides = [1, 1]} : vector<2x8xf32> to vector<2x1xf32>
    %218 = vector.broadcast %217 : vector<2x1xf32> to vector<2x32xf32>
    %219 = arith.mulf %218, %37 : vector<2x32xf32>
    %220 = arith.addf %198, %201 : vector<2x32xf32>
    %221 = arith.addf %204, %207 : vector<2x32xf32>
    %222 = arith.addf %210, %213 : vector<2x32xf32>
    %223 = arith.addf %216, %219 : vector<2x32xf32>
    %224 = arith.addf %220, %221 : vector<2x32xf32>
    %225 = arith.addf %222, %223 : vector<2x32xf32>
    %226 = arith.addf %224, %225 : vector<2x32xf32>
    %227 = arith.addf %195, %226 : vector<2x32xf32>
    %228 = arith.negf %227 : vector<2x32xf32>
    %229 = math.exp %228 : vector<2x32xf32>
    %cst_16 = arith.constant 1.000000e+00 : f32
    %230 = vector.broadcast %cst_16 : f32 to vector<2x32xf32>
    %231 = arith.addf %230, %229 : vector<2x32xf32>
    %232 = arith.divf %230, %231 : vector<2x32xf32>
    %233 = vector.extract_strided_slice %227 {offsets = [0, 16], sizes = [2, 8], strides = [1, 1]} : vector<2x32xf32> to vector<2x8xf32>
    %234 = math.tanh %233 : vector<2x8xf32>
    %235 = vector.extract_strided_slice %232 {offsets = [0, 8], sizes = [2, 8], strides = [1, 1]} : vector<2x32xf32> to vector<2x8xf32>
    %236 = arith.mulf %235, %191 : vector<2x8xf32>
    %237 = vector.extract_strided_slice %232 {offsets = [0, 0], sizes = [2, 8], strides = [1, 1]} : vector<2x32xf32> to vector<2x8xf32>
    %238 = arith.mulf %237, %234 : vector<2x8xf32>
    %239 = arith.addf %236, %238 : vector<2x8xf32>
    %240 = vector.extract_strided_slice %232 {offsets = [0, 24], sizes = [2, 8], strides = [1, 1]} : vector<2x32xf32> to vector<2x8xf32>
    %241 = math.tanh %239 : vector<2x8xf32>
    %242 = arith.mulf %240, %241 : vector<2x8xf32>
    %243 = vector.extract_strided_slice %13 {offsets = [10, 0], sizes = [2, 32], strides = [1, 1]} : vector<16x32xf32> to vector<2x32xf32>
    %244 = vector.extract_strided_slice %242 {offsets = [0, 0], sizes = [2, 1], strides = [1, 1]} : vector<2x8xf32> to vector<2x1xf32>
    %245 = vector.broadcast %244 : vector<2x1xf32> to vector<2x32xf32>
    %246 = arith.mulf %245, %16 : vector<2x32xf32>
    %247 = vector.extract_strided_slice %242 {offsets = [0, 1], sizes = [2, 1], strides = [1, 1]} : vector<2x8xf32> to vector<2x1xf32>
    %248 = vector.broadcast %247 : vector<2x1xf32> to vector<2x32xf32>
    %249 = arith.mulf %248, %19 : vector<2x32xf32>
    %250 = vector.extract_strided_slice %242 {offsets = [0, 2], sizes = [2, 1], strides = [1, 1]} : vector<2x8xf32> to vector<2x1xf32>
    %251 = vector.broadcast %250 : vector<2x1xf32> to vector<2x32xf32>
    %252 = arith.mulf %251, %22 : vector<2x32xf32>
    %253 = vector.extract_strided_slice %242 {offsets = [0, 3], sizes = [2, 1], strides = [1, 1]} : vector<2x8xf32> to vector<2x1xf32>
    %254 = vector.broadcast %253 : vector<2x1xf32> to vector<2x32xf32>
    %255 = arith.mulf %254, %25 : vector<2x32xf32>
    %256 = vector.extract_strided_slice %242 {offsets = [0, 4], sizes = [2, 1], strides = [1, 1]} : vector<2x8xf32> to vector<2x1xf32>
    %257 = vector.broadcast %256 : vector<2x1xf32> to vector<2x32xf32>
    %258 = arith.mulf %257, %28 : vector<2x32xf32>
    %259 = vector.extract_strided_slice %242 {offsets = [0, 5], sizes = [2, 1], strides = [1, 1]} : vector<2x8xf32> to vector<2x1xf32>
    %260 = vector.broadcast %259 : vector<2x1xf32> to vector<2x32xf32>
    %261 = arith.mulf %260, %31 : vector<2x32xf32>
    %262 = vector.extract_strided_slice %242 {offsets = [0, 6], sizes = [2, 1], strides = [1, 1]} : vector<2x8xf32> to vector<2x1xf32>
    %263 = vector.broadcast %262 : vector<2x1xf32> to vector<2x32xf32>
    %264 = arith.mulf %263, %34 : vector<2x32xf32>
    %265 = vector.extract_strided_slice %242 {offsets = [0, 7], sizes = [2, 1], strides = [1, 1]} : vector<2x8xf32> to vector<2x1xf32>
    %266 = vector.broadcast %265 : vector<2x1xf32> to vector<2x32xf32>
    %267 = arith.mulf %266, %37 : vector<2x32xf32>
    %268 = arith.addf %246, %249 : vector<2x32xf32>
    %269 = arith.addf %252, %255 : vector<2x32xf32>
    %270 = arith.addf %258, %261 : vector<2x32xf32>
    %271 = arith.addf %264, %267 : vector<2x32xf32>
    %272 = arith.addf %268, %269 : vector<2x32xf32>
    %273 = arith.addf %270, %271 : vector<2x32xf32>
    %274 = arith.addf %272, %273 : vector<2x32xf32>
    %275 = arith.addf %243, %274 : vector<2x32xf32>
    %276 = arith.negf %275 : vector<2x32xf32>
    %277 = math.exp %276 : vector<2x32xf32>
    %cst_17 = arith.constant 1.000000e+00 : f32
    %278 = vector.broadcast %cst_17 : f32 to vector<2x32xf32>
    %279 = arith.addf %278, %277 : vector<2x32xf32>
    %280 = arith.divf %278, %279 : vector<2x32xf32>
    %281 = vector.extract_strided_slice %275 {offsets = [0, 16], sizes = [2, 8], strides = [1, 1]} : vector<2x32xf32> to vector<2x8xf32>
    %282 = math.tanh %281 : vector<2x8xf32>
    %283 = vector.extract_strided_slice %280 {offsets = [0, 8], sizes = [2, 8], strides = [1, 1]} : vector<2x32xf32> to vector<2x8xf32>
    %284 = arith.mulf %283, %239 : vector<2x8xf32>
    %285 = vector.extract_strided_slice %280 {offsets = [0, 0], sizes = [2, 8], strides = [1, 1]} : vector<2x32xf32> to vector<2x8xf32>
    %286 = arith.mulf %285, %282 : vector<2x8xf32>
    %287 = arith.addf %284, %286 : vector<2x8xf32>
    %288 = vector.extract_strided_slice %280 {offsets = [0, 24], sizes = [2, 8], strides = [1, 1]} : vector<2x32xf32> to vector<2x8xf32>
    %289 = math.tanh %287 : vector<2x8xf32>
    %290 = arith.mulf %288, %289 : vector<2x8xf32>
    %291 = vector.extract_strided_slice %13 {offsets = [12, 0], sizes = [2, 32], strides = [1, 1]} : vector<16x32xf32> to vector<2x32xf32>
    %292 = vector.extract_strided_slice %290 {offsets = [0, 0], sizes = [2, 1], strides = [1, 1]} : vector<2x8xf32> to vector<2x1xf32>
    %293 = vector.broadcast %292 : vector<2x1xf32> to vector<2x32xf32>
    %294 = arith.mulf %293, %16 : vector<2x32xf32>
    %295 = vector.extract_strided_slice %290 {offsets = [0, 1], sizes = [2, 1], strides = [1, 1]} : vector<2x8xf32> to vector<2x1xf32>
    %296 = vector.broadcast %295 : vector<2x1xf32> to vector<2x32xf32>
    %297 = arith.mulf %296, %19 : vector<2x32xf32>
    %298 = vector.extract_strided_slice %290 {offsets = [0, 2], sizes = [2, 1], strides = [1, 1]} : vector<2x8xf32> to vector<2x1xf32>
    %299 = vector.broadcast %298 : vector<2x1xf32> to vector<2x32xf32>
    %300 = arith.mulf %299, %22 : vector<2x32xf32>
    %301 = vector.extract_strided_slice %290 {offsets = [0, 3], sizes = [2, 1], strides = [1, 1]} : vector<2x8xf32> to vector<2x1xf32>
    %302 = vector.broadcast %301 : vector<2x1xf32> to vector<2x32xf32>
    %303 = arith.mulf %302, %25 : vector<2x32xf32>
    %304 = vector.extract_strided_slice %290 {offsets = [0, 4], sizes = [2, 1], strides = [1, 1]} : vector<2x8xf32> to vector<2x1xf32>
    %305 = vector.broadcast %304 : vector<2x1xf32> to vector<2x32xf32>
    %306 = arith.mulf %305, %28 : vector<2x32xf32>
    %307 = vector.extract_strided_slice %290 {offsets = [0, 5], sizes = [2, 1], strides = [1, 1]} : vector<2x8xf32> to vector<2x1xf32>
    %308 = vector.broadcast %307 : vector<2x1xf32> to vector<2x32xf32>
    %309 = arith.mulf %308, %31 : vector<2x32xf32>
    %310 = vector.extract_strided_slice %290 {offsets = [0, 6], sizes = [2, 1], strides = [1, 1]} : vector<2x8xf32> to vector<2x1xf32>
    %311 = vector.broadcast %310 : vector<2x1xf32> to vector<2x32xf32>
    %312 = arith.mulf %311, %34 : vector<2x32xf32>
    %313 = vector.extract_strided_slice %290 {offsets = [0, 7], sizes = [2, 1], strides = [1, 1]} : vector<2x8xf32> to vector<2x1xf32>
    %314 = vector.broadcast %313 : vector<2x1xf32> to vector<2x32xf32>
    %315 = arith.mulf %314, %37 : vector<2x32xf32>
    %316 = arith.addf %294, %297 : vector<2x32xf32>
    %317 = arith.addf %300, %303 : vector<2x32xf32>
    %318 = arith.addf %306, %309 : vector<2x32xf32>
    %319 = arith.addf %312, %315 : vector<2x32xf32>
    %320 = arith.addf %316, %317 : vector<2x32xf32>
    %321 = arith.addf %318, %319 : vector<2x32xf32>
    %322 = arith.addf %320, %321 : vector<2x32xf32>
    %323 = arith.addf %291, %322 : vector<2x32xf32>
    %324 = arith.negf %323 : vector<2x32xf32>
    %325 = math.exp %324 : vector<2x32xf32>
    %cst_18 = arith.constant 1.000000e+00 : f32
    %326 = vector.broadcast %cst_18 : f32 to vector<2x32xf32>
    %327 = arith.addf %326, %325 : vector<2x32xf32>
    %328 = arith.divf %326, %327 : vector<2x32xf32>
    %329 = vector.extract_strided_slice %323 {offsets = [0, 16], sizes = [2, 8], strides = [1, 1]} : vector<2x32xf32> to vector<2x8xf32>
    %330 = math.tanh %329 : vector<2x8xf32>
    %331 = vector.extract_strided_slice %328 {offsets = [0, 8], sizes = [2, 8], strides = [1, 1]} : vector<2x32xf32> to vector<2x8xf32>
    %332 = arith.mulf %331, %287 : vector<2x8xf32>
    %333 = vector.extract_strided_slice %328 {offsets = [0, 0], sizes = [2, 8], strides = [1, 1]} : vector<2x32xf32> to vector<2x8xf32>
    %334 = arith.mulf %333, %330 : vector<2x8xf32>
    %335 = arith.addf %332, %334 : vector<2x8xf32>
    %336 = vector.extract_strided_slice %328 {offsets = [0, 24], sizes = [2, 8], strides = [1, 1]} : vector<2x32xf32> to vector<2x8xf32>
    %337 = math.tanh %335 : vector<2x8xf32>
    %338 = arith.mulf %336, %337 : vector<2x8xf32>
    %339 = vector.extract_strided_slice %13 {offsets = [14, 0], sizes = [2, 32], strides = [1, 1]} : vector<16x32xf32> to vector<2x32xf32>
    %340 = vector.extract_strided_slice %338 {offsets = [0, 0], sizes = [2, 1], strides = [1, 1]} : vector<2x8xf32> to vector<2x1xf32>
    %341 = vector.broadcast %340 : vector<2x1xf32> to vector<2x32xf32>
    %342 = arith.mulf %341, %16 : vector<2x32xf32>
    %343 = vector.extract_strided_slice %338 {offsets = [0, 1], sizes = [2, 1], strides = [1, 1]} : vector<2x8xf32> to vector<2x1xf32>
    %344 = vector.broadcast %343 : vector<2x1xf32> to vector<2x32xf32>
    %345 = arith.mulf %344, %19 : vector<2x32xf32>
    %346 = vector.extract_strided_slice %338 {offsets = [0, 2], sizes = [2, 1], strides = [1, 1]} : vector<2x8xf32> to vector<2x1xf32>
    %347 = vector.broadcast %346 : vector<2x1xf32> to vector<2x32xf32>
    %348 = arith.mulf %347, %22 : vector<2x32xf32>
    %349 = vector.extract_strided_slice %338 {offsets = [0, 3], sizes = [2, 1], strides = [1, 1]} : vector<2x8xf32> to vector<2x1xf32>
    %350 = vector.broadcast %349 : vector<2x1xf32> to vector<2x32xf32>
    %351 = arith.mulf %350, %25 : vector<2x32xf32>
    %352 = vector.extract_strided_slice %338 {offsets = [0, 4], sizes = [2, 1], strides = [1, 1]} : vector<2x8xf32> to vector<2x1xf32>
    %353 = vector.broadcast %352 : vector<2x1xf32> to vector<2x32xf32>
    %354 = arith.mulf %353, %28 : vector<2x32xf32>
    %355 = vector.extract_strided_slice %338 {offsets = [0, 5], sizes = [2, 1], strides = [1, 1]} : vector<2x8xf32> to vector<2x1xf32>
    %356 = vector.broadcast %355 : vector<2x1xf32> to vector<2x32xf32>
    %357 = arith.mulf %356, %31 : vector<2x32xf32>
    %358 = vector.extract_strided_slice %338 {offsets = [0, 6], sizes = [2, 1], strides = [1, 1]} : vector<2x8xf32> to vector<2x1xf32>
    %359 = vector.broadcast %358 : vector<2x1xf32> to vector<2x32xf32>
    %360 = arith.mulf %359, %34 : vector<2x32xf32>
    %361 = vector.extract_strided_slice %338 {offsets = [0, 7], sizes = [2, 1], strides = [1, 1]} : vector<2x8xf32> to vector<2x1xf32>
    %362 = vector.broadcast %361 : vector<2x1xf32> to vector<2x32xf32>
    %363 = arith.mulf %362, %37 : vector<2x32xf32>
    %364 = arith.addf %342, %345 : vector<2x32xf32>
    %365 = arith.addf %348, %351 : vector<2x32xf32>
    %366 = arith.addf %354, %357 : vector<2x32xf32>
    %367 = arith.addf %360, %363 : vector<2x32xf32>
    %368 = arith.addf %364, %365 : vector<2x32xf32>
    %369 = arith.addf %366, %367 : vector<2x32xf32>
    %370 = arith.addf %368, %369 : vector<2x32xf32>
    %371 = arith.addf %339, %370 : vector<2x32xf32>
    %372 = arith.negf %371 : vector<2x32xf32>
    %373 = math.exp %372 : vector<2x32xf32>
    %cst_19 = arith.constant 1.000000e+00 : f32
    %374 = vector.broadcast %cst_19 : f32 to vector<2x32xf32>
    %375 = arith.addf %374, %373 : vector<2x32xf32>
    %376 = arith.divf %374, %375 : vector<2x32xf32>
    %377 = vector.extract_strided_slice %371 {offsets = [0, 16], sizes = [2, 8], strides = [1, 1]} : vector<2x32xf32> to vector<2x8xf32>
    %378 = math.tanh %377 : vector<2x8xf32>
    %379 = vector.extract_strided_slice %376 {offsets = [0, 8], sizes = [2, 8], strides = [1, 1]} : vector<2x32xf32> to vector<2x8xf32>
    %380 = arith.mulf %379, %335 : vector<2x8xf32>
    %381 = vector.extract_strided_slice %376 {offsets = [0, 0], sizes = [2, 8], strides = [1, 1]} : vector<2x32xf32> to vector<2x8xf32>
    %382 = arith.mulf %381, %378 : vector<2x8xf32>
    %383 = arith.addf %380, %382 : vector<2x8xf32>
    %384 = vector.extract_strided_slice %376 {offsets = [0, 24], sizes = [2, 8], strides = [1, 1]} : vector<2x32xf32> to vector<2x8xf32>
    %385 = math.tanh %383 : vector<2x8xf32>
    %386 = arith.mulf %384, %385 : vector<2x8xf32>
    %cst_20 = arith.constant dense<0.000000e+00> : vector<2x4xf32>
    %387 = tpu.matmul %386, %7, %cst_20 {dimension_numbers = #tpu.dot_dimension_numbers<[1], [0], [0], [1], [0, 0, 1, 1], [], []>} : vector<2x8xf32>, vector<8x4xf32>, vector<2x4xf32> -> vector<2x4xf32>
    %388 = vector.broadcast %9 : vector<1x4xf32> to vector<2x4xf32>
    %389 = arith.addf %387, %388 : vector<2x4xf32>
    %cst_21 = arith.constant 0.000000e+00 : f32
    %390 = vector.broadcast %cst_21 : f32 to vector<2x4xf32>
    %391 = arith.maximumf %389, %390 : vector<2x4xf32>
    %c0_22 = arith.constant 0 : index
    %c0_23 = arith.constant 0 : index
    %392 = vector.load %arg4[%c0_22, %c0_23] : memref<2x4xf32, #tpu.memory_space<vmem>>, vector<2x4xf32>
    tpu.vector_store %arg4[%c0_22, %c0_23], %391 {strides = array<i32>} : memref<2x4xf32, #tpu.memory_space<vmem>>, vector<2x4xf32>,
    return
  }
  func.func @transform_0(%arg0: i32, %arg1: memref<1xi32, #tpu.memory_space<smem>>) -> (i32, i32) {
    %c0_i32 = arith.constant 0 : i32
    %c0_i32_0 = arith.constant 0 : i32
    %c0_i32_1 = arith.constant 0 : i32
    return %c0_i32, %c0_i32_0 : i32, i32
  }
  func.func @transform_1(%arg0: i32, %arg1: memref<1xi32, #tpu.memory_space<smem>>) -> (i32, i32, i32) {
    %c0 = arith.constant 0 : index
    %0 = memref.load %arg1[%c0] : memref<1xi32, #tpu.memory_space<smem>>
    %c0_i32 = arith.constant 0 : i32
    %c0_i32_0 = arith.constant 0 : i32
    %c0_i32_1 = arith.constant 0 : i32
    return %0, %c0_i32, %c0_i32_0 : i32, i32, i32
  }
  func.func @transform_2(%arg0: i32, %arg1: memref<1xi32, #tpu.memory_space<smem>>) -> (i32, i32) {
    %c0_i32 = arith.constant 0 : i32
    %c0_i32_0 = arith.constant 0 : i32
    %c0_i32_1 = arith.constant 0 : i32
    return %c0_i32, %c0_i32_0 : i32, i32
  }
}

</mosaic_0001>

<llo_original>
// kernel: tpu_custom_call.1
$region0: #{tpu_custom_call.1}
  #allocation0 [shape = 'u32[]', space=smem, size = 0x4, offset = 0x4, fixed_abs, tag = 'smem constant byte address 0x4 - core index']
  #allocation1 [shape = 'u32[144,128]{1,0:T(1,128)}', space=vmem, size = 0x12000, scoped, tag = 'internal scratch']
  #allocation2 [shape = 's32[1]{0}', space=sflag, size = 0x4, scoped, tag = 'scoped memory for tpu_custom_call.1']
  #allocation3 [shape = 's32[1]{0:T(128)S(6)}', space=smem, size = 0x200, scoped, tag = 'prefetched SMEM operand 0']
  %s0 = inlined_call_operand.<no memory space> [shape: s32[1], index: 0, kind: input, shape index: {}]
  %s1 = inlined_call_operand.vmem [shape: f32[16,4], index: 1, kind: input, shape index: {}]
  %s2 = inlined_call_operand.vmem [shape: f32[3,40,32], index: 2, kind: input, shape index: {}]
  %s3 = inlined_call_operand.hbm [shape: f32[2,4], index: 3, kind: output, shape index: {}]
  %s4 = sld [smem:[#allocation0]]
  $region18: #{tpu_custom_call.1} parent=0
    _
  %s6 = ssub.s32 1, %s4
  %s7 = scalar_select 0, %s6, %s4
  %8 = sst [smem:[#allocation3]] %s0
  $region1: #{tpu_custom_call.1} parent=0
    #allocation4 [shape = 'u8[1024]{0}', space=vmem, size = 0x400, scoped, tag = 'output window, operand 0, single buffered']
    #allocation5 [shape = 's32[1]{0}', space=sflag, size = 0x4, scoped, tag = 'scoped memory for tpu_custom_call.1']
    %9 = vsyncpa [#allocation5], 0
    // Predicated region
    $region2: #{tpu_custom_call.1} parent=1 // pred_check
      _
    $region3: #{tpu_custom_call.1} parent=1 // pred_check_branch
      %11 = sbr.rel (0) target = $region5
    $region4: #{tpu_custom_call.1} parent=1 // pred_region
      _
    $region5: #{tpu_custom_call.1} parent=1 // pred_fallthru
      _
    // Predicated region
    $region6: #{tpu_custom_call.1} parent=1 // pred_check
      _
    $region7: #{tpu_custom_call.1} parent=1 // pred_check_branch
      %13 = sbr.rel (0) target = $region9
    $region8: #{tpu_custom_call.1} parent=1 // pred_region
      %s14 = sld [smem:[#allocation3]]
      %p15 = scmp.lt.s32.totalorder %s14, 2
      %s16 = scalar_select %p15, %s14, 2
      %s17 = smul.addr %s16, 5
      %s18 = smul.addr %s17, 8
      %s19 = scalar_lea.vmem %s2, %s18
      %s20 = sld [smem:[#allocation3]]
    $region9: #{tpu_custom_call.1} parent=1 // pred_fallthru
      _
    %s21 = sld [smem:[#allocation3]]
    %p22 = scmp.lt.s32.totalorder %s21, 2
    %s23 = scalar_select %p22, %s21, 2
    %s24 = smul.addr %s23, 5
    %s25 = smul.addr %s24, 8
    %s26 = scalar_lea.vmem %s2, %s25
    %s27 = sld [smem:[#allocation3]]
    %p28 = scmp.lt.s32.totalorder %s27, 2
    %s29 = scalar_select %p28, %s27, 2
    %s30 = smul.addr %s29, 5
    %s31 = smul.addr %s30, 8
    %s32 = scalar_lea.vmem %s2, %s31
    %s33 = sld [smem:[#allocation3]]
    %v34 = vld [vmem:[%s32] sm:$0xf]
    %v35 = vld [vmem:[%s32 + $0x8] sm:$0xff]
    %v36 = vld [vmem:[%s32 + $0x10] sm:$0x1]
    %v37 = vld [vmem:[%s32 + $0x18] sm:$0xff]
    %v38 = vld [vmem:[%s32 + $0x20] sm:$0x1]
    %v39 = vld [vmem:[%s1] sm:$0xff]
    %v40 = vld [vmem:[%s1 + $0x8] sm:$0xff]
    %v41 = vlaneseq
    %v42 = vshrl.u32 %v41, 7
    %v43 = vsub.s32 0, %v42
    %v44 = vrot.slane %v36, %v43
    %vm45 = vcmask 31744
    %v47 = vsel %vm45, %v39, 0
    %v50 = vsel %vm45, %v40, 0
    %vm52 = vcmask 1043456
    %v54 = vsel %vm52, %v34, 0
    %56 = vmatprep.subr.mxu0 0.0
    %57 = vmatpush1.msra.mxu0 0.0
    %58 = vmatprep.subr.mxu0 0.0
    %59 = vmatpush1.msra.mxu0 0.0
    %60 = vmatprep.subr.mxu0 0.0
    %61 = vmatpush1.msra.mxu0 0.0
    %62 = vmatprep.subr.mxu0 0.0
    %63 = vmatpush1.msra.mxu0 0.0
    %64 = vmatprep.subr.mxu0 0.0
    %65 = vmatpush1.msra.mxu0 0.0
    %66 = vmatprep.subr.mxu0 0.0
    %67 = vmatpush1.msra.mxu0 0.0
    %68 = vmatprep.subr.mxu0 0.0
    %69 = vmatpush1.msra.mxu0 0.0
    %70 = vmatprep.subr.mxu0 0.0
    %71 = vmatpush1.msra.mxu0 0.0
    %72 = vmatprep.subr.mxu0 0.0
    %73 = vmatpush1.msra.mxu0 0.0
    %74 = vmatprep.subr.mxu0 0.0
    %75 = vmatpush1.msra.mxu0 0.0
    %76 = vmatprep.subr.mxu0 0.0
    %77 = vmatpush1.msra.mxu0 0.0
    %78 = vmatprep.subr.mxu0 0.0
    %79 = vmatpush1.msra.mxu0 0.0
    %80 = vmatprep.subr.mxu0 0.0
    %81 = vmatpush1.msra.mxu0 0.0
    %82 = vmatprep.subr.mxu0 0.0
    %83 = vmatpush1.msra.mxu0 0.0
    %84 = vmatprep.subr.mxu0 0.0
    %85 = vmatpush1.msra.mxu0 0.0
    %86 = vmatprep.subr.mxu0 0.0
    %87 = vmatpush1.msra.mxu0 %v54
    %88 = vmatprep.subr.mxu0 0.0
    %89 = vmatpush2.msra.mxu0 0.0
    %90 = vmatprep.subr.mxu0 0.0
    %91 = vmatpush2.msra.mxu0 0.0
    %92 = vmatprep.subr.mxu0 0.0
    %93 = vmatpush2.msra.mxu0 0.0
    %94 = vmatprep.subr.mxu0 0.0
    %95 = vmatpush2.msra.mxu0 0.0
    %96 = vmatprep.subr.mxu0 0.0
    %97 = vmatpush2.msra.mxu0 0.0
    %98 = vmatprep.subr.mxu0 0.0
    %99 = vmatpush2.msra.mxu0 0.0
    %100 = vmatprep.subr.mxu0 0.0
    %101 = vmatpush2.msra.mxu0 0.0
    %102 = vmatprep.subr.mxu0 0.0
    %103 = vmatpush2.msra.mxu0 0.0
    %104 = vmatprep.subr.mxu0 0.0
    %105 = vmatpush2.msra.mxu0 0.0
    %106 = vmatprep.subr.mxu0 0.0
    %107 = vmatpush2.msra.mxu0 0.0
    %108 = vmatprep.subr.mxu0 0.0
    %109 = vmatpush2.msra.mxu0 0.0
    %110 = vmatprep.subr.mxu0 0.0
    %111 = vmatpush2.msra.mxu0 0.0
    %112 = vmatprep.subr.mxu0 0.0
    %113 = vmatpush2.msra.mxu0 0.0
    %114 = vmatprep.subr.mxu0 0.0
    %115 = vmatpush2.msra.mxu0 0.0
    %116 = vmatprep.subr.mxu0 0.0
    %117 = vmatpush2.msra.mxu0 0.0
    %118 = vmatprep.subr.mxu0 0.0
    %119 = vmatpush2.msra.mxu0 0.0
    %120 = vmatprep.mubr.f32.mxu0 0.0
    %121 = vmatmul.mubr.f32.gmra.mxu0 %v47
    %v122 = vpop.f32.mrf.mxu0
    %v123 = vadd.f32 %v44, %v122
    %v124 = vpop.f32.mrf.mxu0
    %125 = vmatprep.mubr.f32.mxu0 0.0
    %126 = vmatmul.mubr.f32.gmra.mxu0 %v50
    %v127 = vpop.f32.mrf.mxu0
    %v128 = vadd.f32 %v44, %v127
    %v129 = vpop.f32.mrf.mxu0
    %130 = vdwg.mxu0
    %v131 = vlaneseq
    %v132 = vshrl.u32 %v131, 7
    %v133 = vsub.s32 0, %v132
    %v134 = vrot.slane %v35, %v133
    %v135 = vlaneseq
    %v136 = vshrl.u32 %v135, 7
    %v137 = vsub.s32 1, %v136
    %v138 = vrot.slane %v35, %v137
    %v139 = vlaneseq
    %v140 = vshrl.u32 %v139, 7
    %v141 = vsub.s32 2, %v140
    %v142 = vrot.slane %v35, %v141
    %v143 = vlaneseq
    %v144 = vshrl.u32 %v143, 7
    %v145 = vsub.s32 3, %v144
    %v146 = vrot.slane %v35, %v145
    %v147 = vlaneseq
    %v148 = vshrl.u32 %v147, 7
    %v149 = vsub.s32 4, %v148
    %v150 = vrot.slane %v35, %v149
    %v151 = vlaneseq
    %v152 = vshrl.u32 %v151, 7
    %v153 = vsub.s32 5, %v152
    %v154 = vrot.slane %v35, %v153
    %v155 = vlaneseq
    %v156 = vshrl.u32 %v155, 7
    %v157 = vsub.s32 6, %v156
    %v158 = vrot.slane %v35, %v157
    %v159 = vlaneseq
    %v160 = vshrl.u32 %v159, 7
    %v161 = vsub.s32 7, %v160
    %v162 = vrot.slane %v35, %v161
    %v163 = vxor.u32 %v123, 2147483648
    %v164 = vmul.f32 %v163, 1.442695
    %v165 = vpow.pop %v164
    %v166 = vadd.f32 %v165, 1.0
    %v167 = vrcp.pop %v166
    %v168 = vmul.f32 1.0, %v167
    %v169 = vtanh.pop %v123
    %171 = vrot.lane.b32.xlu0 %v169, 112
    %v172 = vpop.permute.xlu0 %171
    %v174 = vmul.f32 %v168, %v172
    %v175 = vtanh.pop %v174
    %177 = vrot.lane.b32.xlu0 %v175, 24
    %v178 = vpop.permute.xlu0 %177
    %v180 = vmul.f32 %v168, %v178
    %182 = vset.pattern.permute.xlu0 24
    %183 = vperm.xlu0 %182, %v180
    %v184 = vpop.permute.xlu0 %183
    %v186 = vmul.f32 %v184, %v134
    %187 = vset.pattern.permute.xlu0 25
    %188 = vperm.xlu0 %187, %v180
    %v189 = vpop.permute.xlu0 %188
    %v191 = vmul.f32 %v189, %v138
    %192 = vset.pattern.permute.xlu0 26
    %193 = vperm.xlu0 %192, %v180
    %v194 = vpop.permute.xlu0 %193
    %v196 = vmul.f32 %v194, %v142
    %197 = vset.pattern.permute.xlu0 27
    %198 = vperm.xlu0 %197, %v180
    %v199 = vpop.permute.xlu0 %198
    %v201 = vmul.f32 %v199, %v146
    %202 = vset.pattern.permute.xlu0 28
    %203 = vperm.xlu0 %202, %v180
    %v204 = vpop.permute.xlu0 %203
    %v206 = vmul.f32 %v204, %v150
    %207 = vset.pattern.permute.xlu0 29
    %208 = vperm.xlu0 %207, %v180
    %v209 = vpop.permute.xlu0 %208
    %v211 = vmul.f32 %v209, %v154
    %212 = vset.pattern.permute.xlu0 30
    %213 = vperm.xlu0 %212, %v180
    %v214 = vpop.permute.xlu0 %213
    %v216 = vmul.f32 %v214, %v158
    %217 = vset.pattern.permute.xlu0 31
    %218 = vperm.xlu0 %217, %v180
    %v219 = vpop.permute.xlu0 %218
    %v221 = vmul.f32 %v219, %v162
    %v222 = vadd.f32 %v186, %v191
    %v223 = vadd.f32 %v196, %v201
    %v224 = vadd.f32 %v206, %v211
    %v225 = vadd.f32 %v216, %v221
    %v226 = vadd.f32 %v222, %v223
    %v227 = vadd.f32 %v224, %v225
    %v228 = vadd.f32 %v226, %v227
    %v230 = vrot.slane %v228, 6
    %v232 = vadd.f32 %v123, %v230
    %v233 = vxor.u32 %v232, 2147483648
    %v234 = vmul.f32 %v233, 1.442695
    %v235 = vpow.pop %v234
    %v236 = vadd.f32 %v235, 1.0
    %v237 = vrcp.pop %v236
    %v238 = vmul.f32 1.0, %v237
    %v239 = vtanh.pop %v232
    %v241 = vrot.slane %v174, 6
    %242 = vrot.lane.b32.xlu0 %v241, 8
    %v243 = vpop.permute.xlu0 %242
    %v245 = vmul.f32 %v238, %v243
    %247 = vrot.lane.b32.xlu0 %v239, 112
    %v248 = vpop.permute.xlu0 %247
    %v250 = vmul.f32 %v238, %v248
    %252 = vrot.lane.b32.xlu0 %v250, 8
    %v253 = vpop.permute.xlu0 %252
    %v255 = vadd.f32 %v245, %v253
    %v256 = vtanh.pop %v255
    %258 = vrot.lane.b32.xlu0 %v256, 16
    %v259 = vpop.permute.xlu0 %258
    %v261 = vmul.f32 %v238, %v259
    %263 = vset.pattern.permute.xlu0 24
    %264 = vperm.xlu0 %263, %v261
    %v265 = vpop.permute.xlu0 %264
    %v267 = vmul.f32 %v265, %v134
    %268 = vset.pattern.permute.xlu0 25
    %269 = vperm.xlu0 %268, %v261
    %v270 = vpop.permute.xlu0 %269
    %v272 = vmul.f32 %v270, %v138
    %273 = vset.pattern.permute.xlu0 26
    %274 = vperm.xlu0 %273, %v261
    %v275 = vpop.permute.xlu0 %274
    %v277 = vmul.f32 %v275, %v142
    %278 = vset.pattern.permute.xlu0 27
    %279 = vperm.xlu0 %278, %v261
    %v280 = vpop.permute.xlu0 %279
    %v282 = vmul.f32 %v280, %v146
    %283 = vset.pattern.permute.xlu0 28
    %284 = vperm.xlu0 %283, %v261
    %v285 = vpop.permute.xlu0 %284
    %v287 = vmul.f32 %v285, %v150
    %288 = vset.pattern.permute.xlu0 29
    %289 = vperm.xlu0 %288, %v261
    %v290 = vpop.permute.xlu0 %289
    %v292 = vmul.f32 %v290, %v154
    %293 = vset.pattern.permute.xlu0 30
    %294 = vperm.xlu0 %293, %v261
    %v295 = vpop.permute.xlu0 %294
    %v297 = vmul.f32 %v295, %v158
    %298 = vset.pattern.permute.xlu0 31
    %299 = vperm.xlu0 %298, %v261
    %v300 = vpop.permute.xlu0 %299
    %v302 = vmul.f32 %v300, %v162
    %v303 = vadd.f32 %v267, %v272
    %v304 = vadd.f32 %v277, %v282
    %v305 = vadd.f32 %v287, %v292
    %v306 = vadd.f32 %v297, %v302
    %v307 = vadd.f32 %v303, %v304
    %v308 = vadd.f32 %v305, %v306
    %v309 = vadd.f32 %v307, %v308
    %v311 = vrot.slane %v309, 6
    %v313 = vadd.f32 %v123, %v311
    %v314 = vxor.u32 %v313, 2147483648
    %v315 = vmul.f32 %v314, 1.442695
    %v316 = vpow.pop %v315
    %v317 = vadd.f32 %v316, 1.0
    %v318 = vrcp.pop %v317
    %v319 = vmul.f32 1.0, %v318
    %v320 = vtanh.pop %v313
    %v322 = vrot.slane %v255, 6
    %v324 = vmul.f32 %v319, %v322
    %326 = vrot.lane.b32.xlu0 %v320, 112
    %v327 = vpop.permute.xlu0 %326
    %v329 = vmul.f32 %v319, %v327
    %331 = vrot.lane.b32.xlu0 %v329, 8
    %v332 = vpop.permute.xlu0 %331
    %v334 = vadd.f32 %v324, %v332
    %v335 = vtanh.pop %v334
    %337 = vrot.lane.b32.xlu0 %v335, 16
    %v338 = vpop.permute.xlu0 %337
    %v340 = vmul.f32 %v319, %v338
    %342 = vset.pattern.permute.xlu0 24
    %343 = vperm.xlu0 %342, %v340
    %v344 = vpop.permute.xlu0 %343
    %v346 = vmul.f32 %v344, %v134
    %347 = vset.pattern.permute.xlu0 25
    %348 = vperm.xlu0 %347, %v340
    %v349 = vpop.permute.xlu0 %348
    %v351 = vmul.f32 %v349, %v138
    %352 = vset.pattern.permute.xlu0 26
    %353 = vperm.xlu0 %352, %v340
    %v354 = vpop.permute.xlu0 %353
    %v356 = vmul.f32 %v354, %v142
    %357 = vset.pattern.permute.xlu0 27
    %358 = vperm.xlu0 %357, %v340
    %v359 = vpop.permute.xlu0 %358
    %v361 = vmul.f32 %v359, %v146
    %362 = vset.pattern.permute.xlu0 28
    %363 = vperm.xlu0 %362, %v340
    %v364 = vpop.permute.xlu0 %363
    %v366 = vmul.f32 %v364, %v150
    %367 = vset.pattern.permute.xlu0 29
    %368 = vperm.xlu0 %367, %v340
    %v369 = vpop.permute.xlu0 %368
    %v371 = vmul.f32 %v369, %v154
    %372 = vset.pattern.permute.xlu0 30
    %373 = vperm.xlu0 %372, %v340
    %v374 = vpop.permute.xlu0 %373
    %v376 = vmul.f32 %v374, %v158
    %377 = vset.pattern.permute.xlu0 31
    %378 = vperm.xlu0 %377, %v340
    %v379 = vpop.permute.xlu0 %378
    %v381 = vmul.f32 %v379, %v162
    %v382 = vadd.f32 %v346, %v351
    %v383 = vadd.f32 %v356, %v361
    %v384 = vadd.f32 %v366, %v371
    %v385 = vadd.f32 %v376, %v381
    %v386 = vadd.f32 %v382, %v383
    %v387 = vadd.f32 %v384, %v385
    %v388 = vadd.f32 %v386, %v387
    %v390 = vrot.slane %v388, 6
    %v392 = vadd.f32 %v123, %v390
    %v393 = vxor.u32 %v392, 2147483648
    %v394 = vmul.f32 %v393, 1.442695
    %v395 = vpow.pop %v394
    %v396 = vadd.f32 %v395, 1.0
    %v397 = vrcp.pop %v396
    %v398 = vmul.f32 1.0, %v397
    %v399 = vtanh.pop %v392
    %v401 = vrot.slane %v334, 6
    %v403 = vmul.f32 %v398, %v401
    %405 = vrot.lane.b32.xlu0 %v399, 112
    %v406 = vpop.permute.xlu0 %405
    %v408 = vmul.f32 %v398, %v406
    %410 = vrot.lane.b32.xlu0 %v408, 8
    %v411 = vpop.permute.xlu0 %410
    %v413 = vadd.f32 %v403, %v411
    %v414 = vtanh.pop %v413
    %416 = vrot.lane.b32.xlu0 %v414, 16
    %v417 = vpop.permute.xlu0 %416
    %v419 = vmul.f32 %v398, %v417
    %421 = vset.pattern.permute.xlu0 24
    %422 = vperm.xlu0 %421, %v419
    %v423 = vpop.permute.xlu0 %422
    %v425 = vmul.f32 %v423, %v134
    %426 = vset.pattern.permute.xlu0 25
    %427 = vperm.xlu0 %426, %v419
    %v428 = vpop.permute.xlu0 %427
    %v430 = vmul.f32 %v428, %v138
    %431 = vset.pattern.permute.xlu0 26
    %432 = vperm.xlu0 %431, %v419
    %v433 = vpop.permute.xlu0 %432
    %v435 = vmul.f32 %v433, %v142
    %436 = vset.pattern.permute.xlu0 27
    %437 = vperm.xlu0 %436, %v419
    %v438 = vpop.permute.xlu0 %437
    %v440 = vmul.f32 %v438, %v146
    %441 = vset.pattern.permute.xlu0 28
    %442 = vperm.xlu0 %441, %v419
    %v443 = vpop.permute.xlu0 %442
    %v445 = vmul.f32 %v443, %v150
    %446 = vset.pattern.permute.xlu0 29
    %447 = vperm.xlu0 %446, %v419
    %v448 = vpop.permute.xlu0 %447
    %v450 = vmul.f32 %v448, %v154
    %451 = vset.pattern.permute.xlu0 30
    %452 = vperm.xlu0 %451, %v419
    %v453 = vpop.permute.xlu0 %452
    %v455 = vmul.f32 %v453, %v158
    %456 = vset.pattern.permute.xlu0 31
    %457 = vperm.xlu0 %456, %v419
    %v458 = vpop.permute.xlu0 %457
    %v460 = vmul.f32 %v458, %v162
    %v461 = vadd.f32 %v425, %v430
    %v462 = vadd.f32 %v435, %v440
    %v463 = vadd.f32 %v445, %v450
    %v464 = vadd.f32 %v455, %v460
    %v465 = vadd.f32 %v461, %v462
    %v466 = vadd.f32 %v463, %v464
    %v467 = vadd.f32 %v465, %v466
    %v469 = vrot.slane %v467, 6
    %v471 = vadd.f32 %v128, %v469
    %v472 = vxor.u32 %v471, 2147483648
    %v473 = vmul.f32 %v472, 1.442695
    %v474 = vpow.pop %v473
    %v475 = vadd.f32 %v474, 1.0
    %v476 = vrcp.pop %v475
    %v477 = vmul.f32 1.0, %v476
    %v478 = vtanh.pop %v471
    %v480 = vrot.slane %v413, 6
    %v482 = vmul.f32 %v477, %v480
    %484 = vrot.lane.b32.xlu0 %v478, 112
    %v485 = vpop.permute.xlu0 %484
    %v487 = vmul.f32 %v477, %v485
    %489 = vrot.lane.b32.xlu0 %v487, 8
    %v490 = vpop.permute.xlu0 %489
    %v492 = vadd.f32 %v482, %v490
    %v493 = vtanh.pop %v492
    %495 = vrot.lane.b32.xlu0 %v493, 16
    %v496 = vpop.permute.xlu0 %495
    %v498 = vmul.f32 %v477, %v496
    %500 = vset.pattern.permute.xlu0 24
    %501 = vperm.xlu0 %500, %v498
    %v502 = vpop.permute.xlu0 %501
    %v504 = vmul.f32 %v502, %v134
    %505 = vset.pattern.permute.xlu0 25
    %506 = vperm.xlu0 %505, %v498
    %v507 = vpop.permute.xlu0 %506
    %v509 = vmul.f32 %v507, %v138
    %510 = vset.pattern.permute.xlu0 26
    %511 = vperm.xlu0 %510, %v498
    %v512 = vpop.permute.xlu0 %511
    %v514 = vmul.f32 %v512, %v142
    %515 = vset.pattern.permute.xlu0 27
    %516 = vperm.xlu0 %515, %v498
    %v517 = vpop.permute.xlu0 %516
    %v519 = vmul.f32 %v517, %v146
    %520 = vset.pattern.permute.xlu0 28
    %521 = vperm.xlu0 %520, %v498
    %v522 = vpop.permute.xlu0 %521
    %v524 = vmul.f32 %v522, %v150
    %525 = vset.pattern.permute.xlu0 29
    %526 = vperm.xlu0 %525, %v498
    %v527 = vpop.permute.xlu0 %526
    %v529 = vmul.f32 %v527, %v154
    %530 = vset.pattern.permute.xlu0 30
    %531 = vperm.xlu0 %530, %v498
    %v532 = vpop.permute.xlu0 %531
    %v534 = vmul.f32 %v532, %v158
    %535 = vset.pattern.permute.xlu0 31
    %536 = vperm.xlu0 %535, %v498
    %v537 = vpop.permute.xlu0 %536
    %v539 = vmul.f32 %v537, %v162
    %v540 = vadd.f32 %v504, %v509
    %v541 = vadd.f32 %v514, %v519
    %v542 = vadd.f32 %v524, %v529
    %v543 = vadd.f32 %v534, %v539
    %v544 = vadd.f32 %v540, %v541
    %v545 = vadd.f32 %v542, %v543
    %v546 = vadd.f32 %v544, %v545
    %v548 = vrot.slane %v546, 6
    %v550 = vadd.f32 %v128, %v548
    %v551 = vxor.u32 %v550, 2147483648
    %v552 = vmul.f32 %v551, 1.442695
    %v553 = vpow.pop %v552
    %v554 = vadd.f32 %v553, 1.0
    %v555 = vrcp.pop %v554
    %v556 = vmul.f32 1.0, %v555
    %v557 = vtanh.pop %v550
    %v559 = vrot.slane %v492, 6
    %v561 = vmul.f32 %v556, %v559
    %563 = vrot.lane.b32.xlu0 %v557, 112
    %v564 = vpop.permute.xlu0 %563
    %v566 = vmul.f32 %v556, %v564
    %568 = vrot.lane.b32.xlu0 %v566, 8
    %v569 = vpop.permute.xlu0 %568
    %v571 = vadd.f32 %v561, %v569
    %v572 = vtanh.pop %v571
    %574 = vrot.lane.b32.xlu0 %v572, 16
    %v575 = vpop.permute.xlu0 %574
    %v577 = vmul.f32 %v556, %v575
    %579 = vset.pattern.permute.xlu0 24
    %580 = vperm.xlu0 %579, %v577
    %v581 = vpop.permute.xlu0 %580
    %v583 = vmul.f32 %v581, %v134
    %584 = vset.pattern.permute.xlu0 25
    %585 = vperm.xlu0 %584, %v577
    %v586 = vpop.permute.xlu0 %585
    %v588 = vmul.f32 %v586, %v138
    %589 = vset.pattern.permute.xlu0 26
    %590 = vperm.xlu0 %589, %v577
    %v591 = vpop.permute.xlu0 %590
    %v593 = vmul.f32 %v591, %v142
    %594 = vset.pattern.permute.xlu0 27
    %595 = vperm.xlu0 %594, %v577
    %v596 = vpop.permute.xlu0 %595
    %v598 = vmul.f32 %v596, %v146
    %599 = vset.pattern.permute.xlu0 28
    %600 = vperm.xlu0 %599, %v577
    %v601 = vpop.permute.xlu0 %600
    %v603 = vmul.f32 %v601, %v150
    %604 = vset.pattern.permute.xlu0 29
    %605 = vperm.xlu0 %604, %v577
    %v606 = vpop.permute.xlu0 %605
    %v608 = vmul.f32 %v606, %v154
    %609 = vset.pattern.permute.xlu0 30
    %610 = vperm.xlu0 %609, %v577
    %v611 = vpop.permute.xlu0 %610
    %v613 = vmul.f32 %v611, %v158
    %614 = vset.pattern.permute.xlu0 31
    %615 = vperm.xlu0 %614, %v577
    %v616 = vpop.permute.xlu0 %615
    %v618 = vmul.f32 %v616, %v162
    %v619 = vadd.f32 %v583, %v588
    %v620 = vadd.f32 %v593, %v598
    %v621 = vadd.f32 %v603, %v608
    %v622 = vadd.f32 %v613, %v618
    %v623 = vadd.f32 %v619, %v620
    %v624 = vadd.f32 %v621, %v622
    %v625 = vadd.f32 %v623, %v624
    %v627 = vrot.slane %v625, 6
    %v629 = vadd.f32 %v128, %v627
    %v630 = vxor.u32 %v629, 2147483648
    %v631 = vmul.f32 %v630, 1.442695
    %v632 = vpow.pop %v631
    %v633 = vadd.f32 %v632, 1.0
    %v634 = vrcp.pop %v633
    %v635 = vmul.f32 1.0, %v634
    %v636 = vtanh.pop %v629
    %v638 = vrot.slane %v571, 6
    %v640 = vmul.f32 %v635, %v638
    %642 = vrot.lane.b32.xlu0 %v636, 112
    %v643 = vpop.permute.xlu0 %642
    %v645 = vmul.f32 %v635, %v643
    %647 = vrot.lane.b32.xlu0 %v645, 8
    %v648 = vpop.permute.xlu0 %647
    %v650 = vadd.f32 %v640, %v648
    %v651 = vtanh.pop %v650
    %653 = vrot.lane.b32.xlu0 %v651, 16
    %v654 = vpop.permute.xlu0 %653
    %v656 = vmul.f32 %v635, %v654
    %658 = vset.pattern.permute.xlu0 24
    %659 = vperm.xlu0 %658, %v656
    %v660 = vpop.permute.xlu0 %659
    %v662 = vmul.f32 %v660, %v134
    %663 = vset.pattern.permute.xlu0 25
    %664 = vperm.xlu0 %663, %v656
    %v665 = vpop.permute.xlu0 %664
    %v667 = vmul.f32 %v665, %v138
    %668 = vset.pattern.permute.xlu0 26
    %669 = vperm.xlu0 %668, %v656
    %v670 = vpop.permute.xlu0 %669
    %v672 = vmul.f32 %v670, %v142
    %673 = vset.pattern.permute.xlu0 27
    %674 = vperm.xlu0 %673, %v656
    %v675 = vpop.permute.xlu0 %674
    %v677 = vmul.f32 %v675, %v146
    %678 = vset.pattern.permute.xlu0 28
    %679 = vperm.xlu0 %678, %v656
    %v680 = vpop.permute.xlu0 %679
    %v682 = vmul.f32 %v680, %v150
    %683 = vset.pattern.permute.xlu0 29
    %684 = vperm.xlu0 %683, %v656
    %v685 = vpop.permute.xlu0 %684
    %v687 = vmul.f32 %v685, %v154
    %688 = vset.pattern.permute.xlu0 30
    %689 = vperm.xlu0 %688, %v656
    %v690 = vpop.permute.xlu0 %689
    %v692 = vmul.f32 %v690, %v158
    %693 = vset.pattern.permute.xlu0 31
    %694 = vperm.xlu0 %693, %v656
    %v695 = vpop.permute.xlu0 %694
    %v697 = vmul.f32 %v695, %v162
    %v698 = vadd.f32 %v662, %v667
    %v699 = vadd.f32 %v672, %v677
    %v700 = vadd.f32 %v682, %v687
    %v701 = vadd.f32 %v692, %v697
    %v702 = vadd.f32 %v698, %v699
    %v703 = vadd.f32 %v700, %v701
    %v704 = vadd.f32 %v702, %v703
    %v706 = vrot.slane %v704, 6
    %v708 = vadd.f32 %v128, %v706
    %v709 = vxor.u32 %v708, 2147483648
    %v710 = vmul.f32 %v709, 1.442695
    %v711 = vpow.pop %v710
    %v712 = vadd.f32 %v711, 1.0
    %v713 = vrcp.pop %v712
    %v714 = vmul.f32 1.0, %v713
    %v715 = vtanh.pop %v708
    %v717 = vrot.slane %v650, 6
    %v719 = vmul.f32 %v714, %v717
    %721 = vrot.lane.b32.xlu0 %v715, 112
    %v722 = vpop.permute.xlu0 %721
    %v724 = vmul.f32 %v714, %v722
    %726 = vrot.lane.b32.xlu0 %v724, 8
    %v727 = vpop.permute.xlu0 %726
    %v729 = vadd.f32 %v719, %v727
    %v730 = vtanh.pop %v729
    %732 = vrot.lane.b32.xlu0 %v730, 16
    %v733 = vpop.permute.xlu0 %732
    %v735 = vmul.f32 %v714, %v733
    %v736 = vlaneseq
    %v737 = vshrl.u32 %v736, 7
    %v738 = vsub.s32 0, %v737
    %v739 = vrot.slane %v38, %v738
    %v741 = vrot.slane %v735, 6
    %742 = vrot.lane.b32.xlu0 %v741, 104
    %v743 = vpop.permute.xlu0 %742
    %vm744 = vcmask 64512
    %v745 = vsel %vm744, %v743, 0
    %747 = vmatprep.subr.mxu0 0.0
    %748 = vmatpush1.msra.mxu0 0.0
    %749 = vmatprep.subr.mxu0 0.0
    %750 = vmatpush1.msra.mxu0 0.0
    %751 = vmatprep.subr.mxu0 0.0
    %752 = vmatpush1.msra.mxu0 0.0
    %753 = vmatprep.subr.mxu0 0.0
    %754 = vmatpush1.msra.mxu0 0.0
    %755 = vmatprep.subr.mxu0 0.0
    %756 = vmatpush1.msra.mxu0 0.0
    %757 = vmatprep.subr.mxu0 0.0
    %758 = vmatpush1.msra.mxu0 0.0
    %759 = vmatprep.subr.mxu0 0.0
    %760 = vmatpush1.msra.mxu0 0.0
    %761 = vmatprep.subr.mxu0 0.0
    %762 = vmatpush1.msra.mxu0 0.0
    %763 = vmatprep.subr.mxu0 0.0
    %764 = vmatpush1.msra.mxu0 0.0
    %765 = vmatprep.subr.mxu0 0.0
    %766 = vmatpush1.msra.mxu0 0.0
    %767 = vmatprep.subr.mxu0 0.0
    %768 = vmatpush1.msra.mxu0 0.0
    %769 = vmatprep.subr.mxu0 0.0
    %770 = vmatpush1.msra.mxu0 0.0
    %771 = vmatprep.subr.mxu0 0.0
    %772 = vmatpush1.msra.mxu0 0.0
    %773 = vmatprep.subr.mxu0 0.0
    %774 = vmatpush1.msra.mxu0 0.0
    %775 = vmatprep.subr.mxu0 0.0
    %776 = vmatpush1.msra.mxu0 0.0
    %777 = vmatprep.subr.mxu0 0.0
    %778 = vmatpush1.msra.mxu0 %v37
    %779 = vmatprep.subr.mxu0 0.0
    %780 = vmatpush2.msra.mxu0 0.0
    %781 = vmatprep.subr.mxu0 0.0
    %782 = vmatpush2.msra.mxu0 0.0
    %783 = vmatprep.subr.mxu0 0.0
    %784 = vmatpush2.msra.mxu0 0.0
    %785 = vmatprep.subr.mxu0 0.0
    %786 = vmatpush2.msra.mxu0 0.0
    %787 = vmatprep.subr.mxu0 0.0
    %788 = vmatpush2.msra.mxu0 0.0
    %789 = vmatprep.subr.mxu0 0.0
    %790 = vmatpush2.msra.mxu0 0.0
    %791 = vmatprep.subr.mxu0 0.0
    %792 = vmatpush2.msra.mxu0 0.0
    %793 = vmatprep.subr.mxu0 0.0
    %794 = vmatpush2.msra.mxu0 0.0
    %795 = vmatprep.subr.mxu0 0.0
    %796 = vmatpush2.msra.mxu0 0.0
    %797 = vmatprep.subr.mxu0 0.0
    %798 = vmatpush2.msra.mxu0 0.0
    %799 = vmatprep.subr.mxu0 0.0
    %800 = vmatpush2.msra.mxu0 0.0
    %801 = vmatprep.subr.mxu0 0.0
    %802 = vmatpush2.msra.mxu0 0.0
    %803 = vmatprep.subr.mxu0 0.0
    %804 = vmatpush2.msra.mxu0 0.0
    %805 = vmatprep.subr.mxu0 0.0
    %806 = vmatpush2.msra.mxu0 0.0
    %807 = vmatprep.subr.mxu0 0.0
    %808 = vmatpush2.msra.mxu0 0.0
    %809 = vmatprep.subr.mxu0 0.0
    %810 = vmatpush2.msra.mxu0 0.0
    %811 = vmatprep.mubr.f32.mxu0 0.0
    %812 = vmatmul.mubr.f32.gmra.mxu0 %v745
    %v813 = vpop.f32.mrf.mxu0
    %v814 = vadd.f32 %v739, %v813
    %v815 = vpop.f32.mrf.mxu0
    %816 = vdwg.mxu0
    %v817 = vmax.f32 %v814, 0.0
    %vm818 = vcmask 25600
    %819 = vst.msk [vmem:[#allocation4] sm:$0x3] %vm818, %v817
    // Predicated region
    $region10: #{tpu_custom_call.1} parent=1 // pred_check
      _
    $region11: #{tpu_custom_call.1} parent=1 // pred_check_branch
      %821 = sbr.rel (0) target = $region13
    $region12: #{tpu_custom_call.1} parent=1 // pred_region
      %s823 = ssub.s32 32, 32
      %824 = vsyncadd [#allocation5], %s823
      %s826 = sshll.u32 [#allocation4], 4
      %s827 = int_to_ptr.vmem [resolvable:$true] %s826
      %829 = dma.vmem_to_hbm [thread:$0]  %s827, 32, %s3, [#allocation5]
    $region13: #{tpu_custom_call.1} parent=1 // pred_fallthru
      _
    // Predicated region
    $region14: #{tpu_custom_call.1} parent=1 // pred_check
      _
    $region15: #{tpu_custom_call.1} parent=1 // pred_check_branch
      %831 = sbr.rel (0) target = $region17
    $region16: #{tpu_custom_call.1} parent=1 // pred_region
      %832 = dma.done [#allocation5], 32
    $region17: #{tpu_custom_call.1} parent=1 // pred_fallthru
      _
    %833 = vsyncpa [#allocation5], 1

</llo_original>
